<compile_context>
chip_gen: v7x
topology: tpu7x:2x2x1
jax: 0.10.0
libtpu: 0.0.40
codegen_flags: <defaults>
</compile_context>

<pallas_src>
import numpy as np
import jax
import jax.numpy as jnp
from jax.experimental import pallas as pl
from jax.experimental.pallas import tpu as pltpu

# ----------------------- small demo configuration -----------------------
B = 16                          # batch (16 so the grid actually iterates: 2 tiles of 8)
D_MODEL = 32                    # hidden size
N_NUM = 4                       # numerical variables
CAT_CLASSES = (5, 7, 3)         # classes per categorical variable
N_CAT = len(CAT_CLASSES)
C_TOT = int(sum(CAT_CLASSES))   # rows of the stacked embedding table
SEQ = N_NUM + N_CAT             # output "variable" axis length


# ----------------------------- Pallas kernel -----------------------------

def _tabular_kernel(x_cat_gid_ref,   # SMEM (B*N_CAT,) int32  -- scalar-prefetched global row ids
                    x_num_ref,       # VMEM (tile_b, N_NUM) f32      (streamed per batch tile)
                    num_wb_ref,      # VMEM (2, N_NUM, D) f32        (resident: [0]=W, [1]=bias)
                    table_ref,       # VMEM (C_TOT, 1, D) f32        (resident stacked embedding table)
                    o_ref):          # VMEM (tile_b, SEQ*D) f32      (lane-dense output slab)
    tile_b, n_num = x_num_ref.shape
    c_tot, _, d = table_ref.shape
    seq = o_ref.shape[1] // d
    n_cat = seq - n_num
    bt = pl.program_id(0)

    # ---- numerical branch (VPU): out[:, i*d:(i+1)*d] = x_num[:, i] * W_i + b_i ----
    x_num = x_num_ref[...]            # (tile_b, n_num)
    wb = num_wb_ref[...]              # (2, n_num, d)
    for i in range(n_num):            # static unroll; direct slice stores, no concat
        o_ref[:, i * d:(i + 1) * d] = (x_num[:, i:i + 1] * wb[0, i:i + 1, :]
                                       + wb[1, i:i + 1, :])

    # ---- categorical branch: true row gather from the VMEM-resident stacked table ----
    for b in range(tile_b):           # static unroll (tile_b kept small)
        base = (bt * tile_b + b) * n_cat
        for j in range(n_cat):
            gid = x_cat_gid_ref[base + j]            # scalar read from SMEM
            gid = jnp.clip(gid, 0, c_tot - 1)        # guard bad ids (no OOB VMEM read)
            lo = (n_num + j) * d
            o_ref[b:b + 1, lo:lo + d] = table_ref[gid]   # (1, d) dynamic row load + store


# ----------------------------- wrapper -----------------------------

def tabular_mapper(x_num, x_cat, params, *, tile_b=None):
    batch = x_num.shape[0]
    if tile_b is None:
        tile_b = batch if batch <= 8 else 8      # (8,128)-friendly; re-derive larger tiles per chip VMEM
    # TODO(synk): pad / guard the final ragged batch tile instead of requiring divisibility.
    assert batch % tile_b == 0, "demo requires batch % tile_b == 0"

    # Fold per-variable offsets into global row ids upstream; flatten for compact SMEM.
    x_cat_gid = (x_cat.astype(jnp.int32) + params['cat_offsets']).reshape(-1)

    out2d = pl.pallas_call(
        _tabular_kernel,
        out_shape=jax.ShapeDtypeStruct((batch, SEQ * D_MODEL), jnp.float32),
        grid_spec=pltpu.PrefetchScalarGridSpec(
            num_scalar_prefetch=1,               # x_cat_gid lands in SMEM
            grid=(batch // tile_b,),
            in_specs=[
                # streamed per batch tile
                pl.BlockSpec((tile_b, N_NUM), lambda i, xc: (i, 0)),
                # resident across all grid steps (constant block index -> DMA'd once)
                pl.BlockSpec((2, N_NUM, D_MODEL), lambda i, xc: (0, 0, 0)),
                pl.BlockSpec((C_TOT, 1, D_MODEL), lambda i, xc: (0, 0, 0)),
            ],
            out_specs=pl.BlockSpec((tile_b, SEQ * D_MODEL), lambda i, xc: (i, 0)),
        ),
        compiler_params=pltpu.CompilerParams(dimension_semantics=("parallel",)),
    )(x_cat_gid, x_num, params['num_wb'], params['cat_table3'])

    # Lane-dense slab -> (B, SEQ, D) outside the kernel (contiguous reshape, ~free).
    return out2d.reshape(batch, SEQ, D_MODEL)


# ----------------------------- parameters -----------------------------

def init_params(key):
    k_w, k_b, k_e = jax.random.split(key, 3)
    # nn.Linear(1, d_model): fan_in = 1 -> uniform(-1, 1) for weight and bias.
    num_w = jax.random.uniform(k_w, (N_NUM, D_MODEL), jnp.float32, -1.0, 1.0)
    num_b = jax.random.uniform(k_b, (N_NUM, D_MODEL), jnp.float32, -1.0, 1.0)
    num_wb = jnp.stack([num_w, num_b], axis=0)               # (2, N_NUM, D) packed
    # nn.Embedding: N(0, 1); tables stacked row-wise into one big table.
    ekeys = jax.random.split(k_e, N_CAT)
    tables = [jax.random.normal(ekeys[j], (CAT_CLASSES[j], D_MODEL), jnp.float32)
              for j in range(N_CAT)]
    cat_table = jnp.concatenate(tables, axis=0)              # (C_TOT, D)
    offsets = np.concatenate([[0], np.cumsum(CAT_CLASSES)[:-1]]).astype(np.int32)
    cat_offsets = jnp.asarray(offsets).reshape(1, N_CAT)     # (1, N_CAT) int32
    return dict(num_wb=num_wb,
                cat_table=cat_table,
                cat_table3=cat_table.reshape(C_TOT, 1, D_MODEL),
                cat_offsets=cat_offsets)


# ----------------------------- pure-JAX reference -----------------------------

def reference(x_num, x_cat, params):
    num = (x_num[:, :, None] * params['num_wb'][0][None, :, :]
           + params['num_wb'][1][None, :, :])
    idx = x_cat + params['cat_offsets']                      # (B, N_CAT) global row ids
    cat = params['cat_table'][idx]                           # embedding gather
    return jnp.concatenate([num, cat], axis=1)


# ----------------------------- main -----------------------------

if __name__ == "__main__":
    key = jax.random.PRNGKey(0)
    k_num, k_cat = jax.random.split(key)
    x_num = jax.random.normal(k_num, (B, N_NUM), jnp.float32)
    cat_keys = jax.random.split(k_cat, N_CAT)
    x_cat = jnp.stack(
        [jax.random.randint(cat_keys[j], (B,), 0, CAT_CLASSES[j], dtype=jnp.int32)
         for j in range(N_CAT)], axis=1)                     # (B, N_CAT) int32

    params = init_params(jax.random.PRNGKey(42))

    out = jax.block_until_ready(tabular_mapper(x_num, x_cat, params))
    assert out.shape == (B, SEQ, D_MODEL), out.shape

    ref = jax.block_until_ready(reference(x_num, x_cat, params))
    np.testing.assert_allclose(np.asarray(out), np.asarray(ref),
                               rtol=1e-6, atol=1e-6)

    print("KERNEL_OK")
</pallas_src>

<mosaic_0001>
module attributes {stable_mosaic.version = 11 : i64} {
  func.func @_tabular_kernel(%arg0: i32, %arg1: memref<48xi32, #tpu.memory_space<smem>>, %arg2: memref<8x4xf32, #tpu.memory_space<vmem>>, %arg3: memref<2x4x32xf32, #tpu.memory_space<vmem>>, %arg4: memref<15x1x32xf32, #tpu.memory_space<vmem>>, %arg5: memref<8x224xf32, #tpu.memory_space<vmem>>) attributes {dimension_semantics = [#tpu.dimension_semantics<parallel>], iteration_bounds = array<i64: 2>, scalar_prefetch = 1 : i64, scratch_operands = 0 : i64, tpu.core_type = #tpu.core_type<tc>, window_params = [{transform_indices = @transform_0, window_bounds = array<i64: 8, 4>}, {pipeline_mode = #tpu.pipeline_mode<synchronous>, transform_indices = @transform_1, window_bounds = array<i64: 2, 4, 32>}, {pipeline_mode = #tpu.pipeline_mode<synchronous>, transform_indices = @transform_2, window_bounds = array<i64: 15, 1, 32>}, {transform_indices = @transform_3, window_bounds = array<i64: 8, 224>}]} {
    %c0 = arith.constant 0 : index
    %c0_0 = arith.constant 0 : index
    %0 = vector.load %arg2[%c0, %c0_0] : memref<8x4xf32, #tpu.memory_space<vmem>>, vector<8x4xf32>
    %c0_1 = arith.constant 0 : index
    %c0_2 = arith.constant 0 : index
    %c0_3 = arith.constant 0 : index
    %1 = vector.load %arg3[%c0_1, %c0_2, %c0_3] : memref<2x4x32xf32, #tpu.memory_space<vmem>>, vector<2x4x32xf32>
    %2 = vector.extract_strided_slice %0 {offsets = [0, 0], sizes = [8, 1], strides = [1, 1]} : vector<8x4xf32> to vector<8x1xf32>
    %3 = vector.extract_strided_slice %1 {offsets = [0, 0, 0], sizes = [1, 1, 32], strides = [1, 1, 1]} : vector<2x4x32xf32> to vector<1x1x32xf32>
    %4 = vector.shape_cast %3 : vector<1x1x32xf32> to vector<1x32xf32>
    %5 = vector.broadcast %2 : vector<8x1xf32> to vector<8x32xf32>
    %6 = vector.broadcast %4 : vector<1x32xf32> to vector<8x32xf32>
    %7 = arith.mulf %5, %6 : vector<8x32xf32>
    %8 = vector.extract_strided_slice %1 {offsets = [1, 0, 0], sizes = [1, 1, 32], strides = [1, 1, 1]} : vector<2x4x32xf32> to vector<1x1x32xf32>
    %9 = vector.shape_cast %8 : vector<1x1x32xf32> to vector<1x32xf32>
    %10 = vector.broadcast %9 : vector<1x32xf32> to vector<8x32xf32>
    %11 = arith.addf %7, %10 : vector<8x32xf32>
    %c0_4 = arith.constant 0 : index
    %c0_5 = arith.constant 0 : index
    %12 = vector.load %arg5[%c0_4, %c0_5] : memref<8x224xf32, #tpu.memory_space<vmem>>, vector<8x32xf32>
    tpu.vector_store %arg5[%c0_4, %c0_5], %11 {strides = array<i32>} : memref<8x224xf32, #tpu.memory_space<vmem>>, vector<8x32xf32>,
    %13 = vector.extract_strided_slice %0 {offsets = [0, 1], sizes = [8, 1], strides = [1, 1]} : vector<8x4xf32> to vector<8x1xf32>
    %14 = vector.extract_strided_slice %1 {offsets = [0, 1, 0], sizes = [1, 1, 32], strides = [1, 1, 1]} : vector<2x4x32xf32> to vector<1x1x32xf32>
    %15 = vector.shape_cast %14 : vector<1x1x32xf32> to vector<1x32xf32>
    %16 = vector.broadcast %13 : vector<8x1xf32> to vector<8x32xf32>
    %17 = vector.broadcast %15 : vector<1x32xf32> to vector<8x32xf32>
    %18 = arith.mulf %16, %17 : vector<8x32xf32>
    %19 = vector.extract_strided_slice %1 {offsets = [1, 1, 0], sizes = [1, 1, 32], strides = [1, 1, 1]} : vector<2x4x32xf32> to vector<1x1x32xf32>
    %20 = vector.shape_cast %19 : vector<1x1x32xf32> to vector<1x32xf32>
    %21 = vector.broadcast %20 : vector<1x32xf32> to vector<8x32xf32>
    %22 = arith.addf %18, %21 : vector<8x32xf32>
    %c0_6 = arith.constant 0 : index
    %c32 = arith.constant 32 : index
    %23 = vector.load %arg5[%c0_6, %c32] : memref<8x224xf32, #tpu.memory_space<vmem>>, vector<8x32xf32>
    tpu.vector_store %arg5[%c0_6, %c32], %22 {strides = array<i32>} : memref<8x224xf32, #tpu.memory_space<vmem>>, vector<8x32xf32>,
    %24 = vector.extract_strided_slice %0 {offsets = [0, 2], sizes = [8, 1], strides = [1, 1]} : vector<8x4xf32> to vector<8x1xf32>
    %25 = vector.extract_strided_slice %1 {offsets = [0, 2, 0], sizes = [1, 1, 32], strides = [1, 1, 1]} : vector<2x4x32xf32> to vector<1x1x32xf32>
    %26 = vector.shape_cast %25 : vector<1x1x32xf32> to vector<1x32xf32>
    %27 = vector.broadcast %24 : vector<8x1xf32> to vector<8x32xf32>
    %28 = vector.broadcast %26 : vector<1x32xf32> to vector<8x32xf32>
    %29 = arith.mulf %27, %28 : vector<8x32xf32>
    %30 = vector.extract_strided_slice %1 {offsets = [1, 2, 0], sizes = [1, 1, 32], strides = [1, 1, 1]} : vector<2x4x32xf32> to vector<1x1x32xf32>
    %31 = vector.shape_cast %30 : vector<1x1x32xf32> to vector<1x32xf32>
    %32 = vector.broadcast %31 : vector<1x32xf32> to vector<8x32xf32>
    %33 = arith.addf %29, %32 : vector<8x32xf32>
    %c0_7 = arith.constant 0 : index
    %c64 = arith.constant 64 : index
    %34 = vector.load %arg5[%c0_7, %c64] : memref<8x224xf32, #tpu.memory_space<vmem>>, vector<8x32xf32>
    tpu.vector_store %arg5[%c0_7, %c64], %33 {strides = array<i32>} : memref<8x224xf32, #tpu.memory_space<vmem>>, vector<8x32xf32>,
    %35 = vector.extract_strided_slice %0 {offsets = [0, 3], sizes = [8, 1], strides = [1, 1]} : vector<8x4xf32> to vector<8x1xf32>
    %36 = vector.extract_strided_slice %1 {offsets = [0, 3, 0], sizes = [1, 1, 32], strides = [1, 1, 1]} : vector<2x4x32xf32> to vector<1x1x32xf32>
    %37 = vector.shape_cast %36 : vector<1x1x32xf32> to vector<1x32xf32>
    %38 = vector.broadcast %35 : vector<8x1xf32> to vector<8x32xf32>
    %39 = vector.broadcast %37 : vector<1x32xf32> to vector<8x32xf32>
    %40 = arith.mulf %38, %39 : vector<8x32xf32>
    %41 = vector.extract_strided_slice %1 {offsets = [1, 3, 0], sizes = [1, 1, 32], strides = [1, 1, 1]} : vector<2x4x32xf32> to vector<1x1x32xf32>
    %42 = vector.shape_cast %41 : vector<1x1x32xf32> to vector<1x32xf32>
    %43 = vector.broadcast %42 : vector<1x32xf32> to vector<8x32xf32>
    %44 = arith.addf %40, %43 : vector<8x32xf32>
    %c0_8 = arith.constant 0 : index
    %c96 = arith.constant 96 : index
    %45 = vector.load %arg5[%c0_8, %c96] : memref<8x224xf32, #tpu.memory_space<vmem>>, vector<8x32xf32>
    tpu.vector_store %arg5[%c0_8, %c96], %44 {strides = array<i32>} : memref<8x224xf32, #tpu.memory_space<vmem>>, vector<8x32xf32>,
    %c8_i32 = arith.constant 8 : i32
    %46 = arith.muli %arg0, %c8_i32 : i32
    %c0_i32 = arith.constant 0 : i32
    %47 = arith.addi %46, %c0_i32 : i32
    %c3_i32 = arith.constant 3 : i32
    %48 = arith.muli %47, %c3_i32 : i32
    %c0_i32_9 = arith.constant 0 : i32
    %49 = arith.addi %48, %c0_i32_9 : i32
    %50 = arith.index_cast %49 : i32 to index
    %51 = memref.load %arg1[%50] : memref<48xi32, #tpu.memory_space<smem>>
    %c0_i32_10 = arith.constant 0 : i32
    %c14_i32 = arith.constant 14 : i32
    %52 = arith.maxsi %c0_i32_10, %51 : i32
    %53 = arith.minsi %c14_i32, %52 : i32
    %54 = arith.index_cast %53 : i32 to index
    %c0_11 = arith.constant 0 : index
    %c0_12 = arith.constant 0 : index
    %55 = vector.load %arg4[%54, %c0_11, %c0_12] : memref<15x1x32xf32, #tpu.memory_space<vmem>>, vector<1x1x32xf32>
    %56 = vector.shape_cast %55 : vector<1x1x32xf32> to vector<1x32xf32>
    %c0_13 = arith.constant 0 : index
    %c128 = arith.constant 128 : index
    %57 = vector.load %arg5[%c0_13, %c128] : memref<8x224xf32, #tpu.memory_space<vmem>>, vector<1x32xf32>
    tpu.vector_store %arg5[%c0_13, %c128], %56 {strides = array<i32>} : memref<8x224xf32, #tpu.memory_space<vmem>>, vector<1x32xf32>,
    %c1_i32 = arith.constant 1 : i32
    %58 = arith.addi %48, %c1_i32 : i32
    %59 = arith.index_cast %58 : i32 to index
    %60 = memref.load %arg1[%59] : memref<48xi32, #tpu.memory_space<smem>>
    %c0_i32_14 = arith.constant 0 : i32
    %c14_i32_15 = arith.constant 14 : i32
    %61 = arith.maxsi %c0_i32_14, %60 : i32
    %62 = arith.minsi %c14_i32_15, %61 : i32
    %63 = arith.index_cast %62 : i32 to index
    %c0_16 = arith.constant 0 : index
    %c0_17 = arith.constant 0 : index
    %64 = vector.load %arg4[%63, %c0_16, %c0_17] : memref<15x1x32xf32, #tpu.memory_space<vmem>>, vector<1x1x32xf32>
    %65 = vector.shape_cast %64 : vector<1x1x32xf32> to vector<1x32xf32>
    %c0_18 = arith.constant 0 : index
    %c160 = arith.constant 160 : index
    %66 = vector.load %arg5[%c0_18, %c160] : memref<8x224xf32, #tpu.memory_space<vmem>>, vector<1x32xf32>
    tpu.vector_store %arg5[%c0_18, %c160], %65 {strides = array<i32>} : memref<8x224xf32, #tpu.memory_space<vmem>>, vector<1x32xf32>,
    %c2_i32 = arith.constant 2 : i32
    %67 = arith.addi %48, %c2_i32 : i32
    %68 = arith.index_cast %67 : i32 to index
    %69 = memref.load %arg1[%68] : memref<48xi32, #tpu.memory_space<smem>>
    %c0_i32_19 = arith.constant 0 : i32
    %c14_i32_20 = arith.constant 14 : i32
    %70 = arith.maxsi %c0_i32_19, %69 : i32
    %71 = arith.minsi %c14_i32_20, %70 : i32
    %72 = arith.index_cast %71 : i32 to index
    %c0_21 = arith.constant 0 : index
    %c0_22 = arith.constant 0 : index
    %73 = vector.load %arg4[%72, %c0_21, %c0_22] : memref<15x1x32xf32, #tpu.memory_space<vmem>>, vector<1x1x32xf32>
    %74 = vector.shape_cast %73 : vector<1x1x32xf32> to vector<1x32xf32>
    %c0_23 = arith.constant 0 : index
    %c192 = arith.constant 192 : index
    %75 = vector.load %arg5[%c0_23, %c192] : memref<8x224xf32, #tpu.memory_space<vmem>>, vector<1x32xf32>
    tpu.vector_store %arg5[%c0_23, %c192], %74 {strides = array<i32>} : memref<8x224xf32, #tpu.memory_space<vmem>>, vector<1x32xf32>,
    %c8_i32_24 = arith.constant 8 : i32
    %76 = arith.muli %arg0, %c8_i32_24 : i32
    %c1_i32_25 = arith.constant 1 : i32
    %77 = arith.addi %76, %c1_i32_25 : i32
    %c3_i32_26 = arith.constant 3 : i32
    %78 = arith.muli %77, %c3_i32_26 : i32
    %c0_i32_27 = arith.constant 0 : i32
    %79 = arith.addi %78, %c0_i32_27 : i32
    %80 = arith.index_cast %79 : i32 to index
    %81 = memref.load %arg1[%80] : memref<48xi32, #tpu.memory_space<smem>>
    %c0_i32_28 = arith.constant 0 : i32
    %c14_i32_29 = arith.constant 14 : i32
    %82 = arith.maxsi %c0_i32_28, %81 : i32
    %83 = arith.minsi %c14_i32_29, %82 : i32
    %84 = arith.index_cast %83 : i32 to index
    %c0_30 = arith.constant 0 : index
    %c0_31 = arith.constant 0 : index
    %85 = vector.load %arg4[%84, %c0_30, %c0_31] : memref<15x1x32xf32, #tpu.memory_space<vmem>>, vector<1x1x32xf32>
    %86 = vector.shape_cast %85 : vector<1x1x32xf32> to vector<1x32xf32>
    %c1 = arith.constant 1 : index
    %c128_32 = arith.constant 128 : index
    %87 = vector.load %arg5[%c1, %c128_32] : memref<8x224xf32, #tpu.memory_space<vmem>>, vector<1x32xf32>
    tpu.vector_store %arg5[%c1, %c128_32], %86 {strides = array<i32>} : memref<8x224xf32, #tpu.memory_space<vmem>>, vector<1x32xf32>,
    %c1_i32_33 = arith.constant 1 : i32
    %88 = arith.addi %78, %c1_i32_33 : i32
    %89 = arith.index_cast %88 : i32 to index
    %90 = memref.load %arg1[%89] : memref<48xi32, #tpu.memory_space<smem>>
    %c0_i32_34 = arith.constant 0 : i32
    %c14_i32_35 = arith.constant 14 : i32
    %91 = arith.maxsi %c0_i32_34, %90 : i32
    %92 = arith.minsi %c14_i32_35, %91 : i32
    %93 = arith.index_cast %92 : i32 to index
    %c0_36 = arith.constant 0 : index
    %c0_37 = arith.constant 0 : index
    %94 = vector.load %arg4[%93, %c0_36, %c0_37] : memref<15x1x32xf32, #tpu.memory_space<vmem>>, vector<1x1x32xf32>
    %95 = vector.shape_cast %94 : vector<1x1x32xf32> to vector<1x32xf32>
    %c1_38 = arith.constant 1 : index
    %c160_39 = arith.constant 160 : index
    %96 = vector.load %arg5[%c1_38, %c160_39] : memref<8x224xf32, #tpu.memory_space<vmem>>, vector<1x32xf32>
    tpu.vector_store %arg5[%c1_38, %c160_39], %95 {strides = array<i32>} : memref<8x224xf32, #tpu.memory_space<vmem>>, vector<1x32xf32>,
    %c2_i32_40 = arith.constant 2 : i32
    %97 = arith.addi %78, %c2_i32_40 : i32
    %98 = arith.index_cast %97 : i32 to index
    %99 = memref.load %arg1[%98] : memref<48xi32, #tpu.memory_space<smem>>
    %c0_i32_41 = arith.constant 0 : i32
    %c14_i32_42 = arith.constant 14 : i32
    %100 = arith.maxsi %c0_i32_41, %99 : i32
    %101 = arith.minsi %c14_i32_42, %100 : i32
    %102 = arith.index_cast %101 : i32 to index
    %c0_43 = arith.constant 0 : index
    %c0_44 = arith.constant 0 : index
    %103 = vector.load %arg4[%102, %c0_43, %c0_44] : memref<15x1x32xf32, #tpu.memory_space<vmem>>, vector<1x1x32xf32>
    %104 = vector.shape_cast %103 : vector<1x1x32xf32> to vector<1x32xf32>
    %c1_45 = arith.constant 1 : index
    %c192_46 = arith.constant 192 : index
    %105 = vector.load %arg5[%c1_45, %c192_46] : memref<8x224xf32, #tpu.memory_space<vmem>>, vector<1x32xf32>
    tpu.vector_store %arg5[%c1_45, %c192_46], %104 {strides = array<i32>} : memref<8x224xf32, #tpu.memory_space<vmem>>, vector<1x32xf32>,
    %c8_i32_47 = arith.constant 8 : i32
    %106 = arith.muli %arg0, %c8_i32_47 : i32
    %c2_i32_48 = arith.constant 2 : i32
    %107 = arith.addi %106, %c2_i32_48 : i32
    %c3_i32_49 = arith.constant 3 : i32
    %108 = arith.muli %107, %c3_i32_49 : i32
    %c0_i32_50 = arith.constant 0 : i32
    %109 = arith.addi %108, %c0_i32_50 : i32
    %110 = arith.index_cast %109 : i32 to index
    %111 = memref.load %arg1[%110] : memref<48xi32, #tpu.memory_space<smem>>
    %c0_i32_51 = arith.constant 0 : i32
    %c14_i32_52 = arith.constant 14 : i32
    %112 = arith.maxsi %c0_i32_51, %111 : i32
    %113 = arith.minsi %c14_i32_52, %112 : i32
    %114 = arith.index_cast %113 : i32 to index
    %c0_53 = arith.constant 0 : index
    %c0_54 = arith.constant 0 : index
    %115 = vector.load %arg4[%114, %c0_53, %c0_54] : memref<15x1x32xf32, #tpu.memory_space<vmem>>, vector<1x1x32xf32>
    %116 = vector.shape_cast %115 : vector<1x1x32xf32> to vector<1x32xf32>
    %c2 = arith.constant 2 : index
    %c128_55 = arith.constant 128 : index
    %117 = vector.load %arg5[%c2, %c128_55] : memref<8x224xf32, #tpu.memory_space<vmem>>, vector<1x32xf32>
    tpu.vector_store %arg5[%c2, %c128_55], %116 {strides = array<i32>} : memref<8x224xf32, #tpu.memory_space<vmem>>, vector<1x32xf32>,
    %c1_i32_56 = arith.constant 1 : i32
    %118 = arith.addi %108, %c1_i32_56 : i32
    %119 = arith.index_cast %118 : i32 to index
    %120 = memref.load %arg1[%119] : memref<48xi32, #tpu.memory_space<smem>>
    %c0_i32_57 = arith.constant 0 : i32
    %c14_i32_58 = arith.constant 14 : i32
    %121 = arith.maxsi %c0_i32_57, %120 : i32
    %122 = arith.minsi %c14_i32_58, %121 : i32
    %123 = arith.index_cast %122 : i32 to index
    %c0_59 = arith.constant 0 : index
    %c0_60 = arith.constant 0 : index
    %124 = vector.load %arg4[%123, %c0_59, %c0_60] : memref<15x1x32xf32, #tpu.memory_space<vmem>>, vector<1x1x32xf32>
    %125 = vector.shape_cast %124 : vector<1x1x32xf32> to vector<1x32xf32>
    %c2_61 = arith.constant 2 : index
    %c160_62 = arith.constant 160 : index
    %126 = vector.load %arg5[%c2_61, %c160_62] : memref<8x224xf32, #tpu.memory_space<vmem>>, vector<1x32xf32>
    tpu.vector_store %arg5[%c2_61, %c160_62], %125 {strides = array<i32>} : memref<8x224xf32, #tpu.memory_space<vmem>>, vector<1x32xf32>,
    %c2_i32_63 = arith.constant 2 : i32
    %127 = arith.addi %108, %c2_i32_63 : i32
    %128 = arith.index_cast %127 : i32 to index
    %129 = memref.load %arg1[%128] : memref<48xi32, #tpu.memory_space<smem>>
    %c0_i32_64 = arith.constant 0 : i32
    %c14_i32_65 = arith.constant 14 : i32
    %130 = arith.maxsi %c0_i32_64, %129 : i32
    %131 = arith.minsi %c14_i32_65, %130 : i32
    %132 = arith.index_cast %131 : i32 to index
    %c0_66 = arith.constant 0 : index
    %c0_67 = arith.constant 0 : index
    %133 = vector.load %arg4[%132, %c0_66, %c0_67] : memref<15x1x32xf32, #tpu.memory_space<vmem>>, vector<1x1x32xf32>
    %134 = vector.shape_cast %133 : vector<1x1x32xf32> to vector<1x32xf32>
    %c2_68 = arith.constant 2 : index
    %c192_69 = arith.constant 192 : index
    %135 = vector.load %arg5[%c2_68, %c192_69] : memref<8x224xf32, #tpu.memory_space<vmem>>, vector<1x32xf32>
    tpu.vector_store %arg5[%c2_68, %c192_69], %134 {strides = array<i32>} : memref<8x224xf32, #tpu.memory_space<vmem>>, vector<1x32xf32>,
    %c8_i32_70 = arith.constant 8 : i32
    %136 = arith.muli %arg0, %c8_i32_70 : i32
    %c3_i32_71 = arith.constant 3 : i32
    %137 = arith.addi %136, %c3_i32_71 : i32
    %c3_i32_72 = arith.constant 3 : i32
    %138 = arith.muli %137, %c3_i32_72 : i32
    %c0_i32_73 = arith.constant 0 : i32
    %139 = arith.addi %138, %c0_i32_73 : i32
    %140 = arith.index_cast %139 : i32 to index
    %141 = memref.load %arg1[%140] : memref<48xi32, #tpu.memory_space<smem>>
    %c0_i32_74 = arith.constant 0 : i32
    %c14_i32_75 = arith.constant 14 : i32
    %142 = arith.maxsi %c0_i32_74, %141 : i32
    %143 = arith.minsi %c14_i32_75, %142 : i32
    %144 = arith.index_cast %143 : i32 to index
    %c0_76 = arith.constant 0 : index
    %c0_77 = arith.constant 0 : index
    %145 = vector.load %arg4[%144, %c0_76, %c0_77] : memref<15x1x32xf32, #tpu.memory_space<vmem>>, vector<1x1x32xf32>
    %146 = vector.shape_cast %145 : vector<1x1x32xf32> to vector<1x32xf32>
    %c3 = arith.constant 3 : index
    %c128_78 = arith.constant 128 : index
    %147 = vector.load %arg5[%c3, %c128_78] : memref<8x224xf32, #tpu.memory_space<vmem>>, vector<1x32xf32>
    tpu.vector_store %arg5[%c3, %c128_78], %146 {strides = array<i32>} : memref<8x224xf32, #tpu.memory_space<vmem>>, vector<1x32xf32>,
    %c1_i32_79 = arith.constant 1 : i32
    %148 = arith.addi %138, %c1_i32_79 : i32
    %149 = arith.index_cast %148 : i32 to index
    %150 = memref.load %arg1[%149] : memref<48xi32, #tpu.memory_space<smem>>
    %c0_i32_80 = arith.constant 0 : i32
    %c14_i32_81 = arith.constant 14 : i32
    %151 = arith.maxsi %c0_i32_80, %150 : i32
    %152 = arith.minsi %c14_i32_81, %151 : i32
    %153 = arith.index_cast %152 : i32 to index
    %c0_82 = arith.constant 0 : index
    %c0_83 = arith.constant 0 : index
    %154 = vector.load %arg4[%153, %c0_82, %c0_83] : memref<15x1x32xf32, #tpu.memory_space<vmem>>, vector<1x1x32xf32>
    %155 = vector.shape_cast %154 : vector<1x1x32xf32> to vector<1x32xf32>
    %c3_84 = arith.constant 3 : index
    %c160_85 = arith.constant 160 : index
    %156 = vector.load %arg5[%c3_84, %c160_85] : memref<8x224xf32, #tpu.memory_space<vmem>>, vector<1x32xf32>
    tpu.vector_store %arg5[%c3_84, %c160_85], %155 {strides = array<i32>} : memref<8x224xf32, #tpu.memory_space<vmem>>, vector<1x32xf32>,
    %c2_i32_86 = arith.constant 2 : i32
    %157 = arith.addi %138, %c2_i32_86 : i32
    %158 = arith.index_cast %157 : i32 to index
    %159 = memref.load %arg1[%158] : memref<48xi32, #tpu.memory_space<smem>>
    %c0_i32_87 = arith.constant 0 : i32
    %c14_i32_88 = arith.constant 14 : i32
    %160 = arith.maxsi %c0_i32_87, %159 : i32
    %161 = arith.minsi %c14_i32_88, %160 : i32
    %162 = arith.index_cast %161 : i32 to index
    %c0_89 = arith.constant 0 : index
    %c0_90 = arith.constant 0 : index
    %163 = vector.load %arg4[%162, %c0_89, %c0_90] : memref<15x1x32xf32, #tpu.memory_space<vmem>>, vector<1x1x32xf32>
    %164 = vector.shape_cast %163 : vector<1x1x32xf32> to vector<1x32xf32>
    %c3_91 = arith.constant 3 : index
    %c192_92 = arith.constant 192 : index
    %165 = vector.load %arg5[%c3_91, %c192_92] : memref<8x224xf32, #tpu.memory_space<vmem>>, vector<1x32xf32>
    tpu.vector_store %arg5[%c3_91, %c192_92], %164 {strides = array<i32>} : memref<8x224xf32, #tpu.memory_space<vmem>>, vector<1x32xf32>,
    %c8_i32_93 = arith.constant 8 : i32
    %166 = arith.muli %arg0, %c8_i32_93 : i32
    %c4_i32 = arith.constant 4 : i32
    %167 = arith.addi %166, %c4_i32 : i32
    %c3_i32_94 = arith.constant 3 : i32
    %168 = arith.muli %167, %c3_i32_94 : i32
    %c0_i32_95 = arith.constant 0 : i32
    %169 = arith.addi %168, %c0_i32_95 : i32
    %170 = arith.index_cast %169 : i32 to index
    %171 = memref.load %arg1[%170] : memref<48xi32, #tpu.memory_space<smem>>
    %c0_i32_96 = arith.constant 0 : i32
    %c14_i32_97 = arith.constant 14 : i32
    %172 = arith.maxsi %c0_i32_96, %171 : i32
    %173 = arith.minsi %c14_i32_97, %172 : i32
    %174 = arith.index_cast %173 : i32 to index
    %c0_98 = arith.constant 0 : index
    %c0_99 = arith.constant 0 : index
    %175 = vector.load %arg4[%174, %c0_98, %c0_99] : memref<15x1x32xf32, #tpu.memory_space<vmem>>, vector<1x1x32xf32>
    %176 = vector.shape_cast %175 : vector<1x1x32xf32> to vector<1x32xf32>
    %c4 = arith.constant 4 : index
    %c128_100 = arith.constant 128 : index
    %177 = vector.load %arg5[%c4, %c128_100] : memref<8x224xf32, #tpu.memory_space<vmem>>, vector<1x32xf32>
    tpu.vector_store %arg5[%c4, %c128_100], %176 {strides = array<i32>} : memref<8x224xf32, #tpu.memory_space<vmem>>, vector<1x32xf32>,
    %c1_i32_101 = arith.constant 1 : i32
    %178 = arith.addi %168, %c1_i32_101 : i32
    %179 = arith.index_cast %178 : i32 to index
    %180 = memref.load %arg1[%179] : memref<48xi32, #tpu.memory_space<smem>>
    %c0_i32_102 = arith.constant 0 : i32
    %c14_i32_103 = arith.constant 14 : i32
    %181 = arith.maxsi %c0_i32_102, %180 : i32
    %182 = arith.minsi %c14_i32_103, %181 : i32
    %183 = arith.index_cast %182 : i32 to index
    %c0_104 = arith.constant 0 : index
    %c0_105 = arith.constant 0 : index
    %184 = vector.load %arg4[%183, %c0_104, %c0_105] : memref<15x1x32xf32, #tpu.memory_space<vmem>>, vector<1x1x32xf32>
    %185 = vector.shape_cast %184 : vector<1x1x32xf32> to vector<1x32xf32>
    %c4_106 = arith.constant 4 : index
    %c160_107 = arith.constant 160 : index
    %186 = vector.load %arg5[%c4_106, %c160_107] : memref<8x224xf32, #tpu.memory_space<vmem>>, vector<1x32xf32>
    tpu.vector_store %arg5[%c4_106, %c160_107], %185 {strides = array<i32>} : memref<8x224xf32, #tpu.memory_space<vmem>>, vector<1x32xf32>,
    %c2_i32_108 = arith.constant 2 : i32
    %187 = arith.addi %168, %c2_i32_108 : i32
    %188 = arith.index_cast %187 : i32 to index
    %189 = memref.load %arg1[%188] : memref<48xi32, #tpu.memory_space<smem>>
    %c0_i32_109 = arith.constant 0 : i32
    %c14_i32_110 = arith.constant 14 : i32
    %190 = arith.maxsi %c0_i32_109, %189 : i32
    %191 = arith.minsi %c14_i32_110, %190 : i32
    %192 = arith.index_cast %191 : i32 to index
    %c0_111 = arith.constant 0 : index
    %c0_112 = arith.constant 0 : index
    %193 = vector.load %arg4[%192, %c0_111, %c0_112] : memref<15x1x32xf32, #tpu.memory_space<vmem>>, vector<1x1x32xf32>
    %194 = vector.shape_cast %193 : vector<1x1x32xf32> to vector<1x32xf32>
    %c4_113 = arith.constant 4 : index
    %c192_114 = arith.constant 192 : index
    %195 = vector.load %arg5[%c4_113, %c192_114] : memref<8x224xf32, #tpu.memory_space<vmem>>, vector<1x32xf32>
    tpu.vector_store %arg5[%c4_113, %c192_114], %194 {strides = array<i32>} : memref<8x224xf32, #tpu.memory_space<vmem>>, vector<1x32xf32>,
    %c8_i32_115 = arith.constant 8 : i32
    %196 = arith.muli %arg0, %c8_i32_115 : i32
    %c5_i32 = arith.constant 5 : i32
    %197 = arith.addi %196, %c5_i32 : i32
    %c3_i32_116 = arith.constant 3 : i32
    %198 = arith.muli %197, %c3_i32_116 : i32
    %c0_i32_117 = arith.constant 0 : i32
    %199 = arith.addi %198, %c0_i32_117 : i32
    %200 = arith.index_cast %199 : i32 to index
    %201 = memref.load %arg1[%200] : memref<48xi32, #tpu.memory_space<smem>>
    %c0_i32_118 = arith.constant 0 : i32
    %c14_i32_119 = arith.constant 14 : i32
    %202 = arith.maxsi %c0_i32_118, %201 : i32
    %203 = arith.minsi %c14_i32_119, %202 : i32
    %204 = arith.index_cast %203 : i32 to index
    %c0_120 = arith.constant 0 : index
    %c0_121 = arith.constant 0 : index
    %205 = vector.load %arg4[%204, %c0_120, %c0_121] : memref<15x1x32xf32, #tpu.memory_space<vmem>>, vector<1x1x32xf32>
    %206 = vector.shape_cast %205 : vector<1x1x32xf32> to vector<1x32xf32>
    %c5 = arith.constant 5 : index
    %c128_122 = arith.constant 128 : index
    %207 = vector.load %arg5[%c5, %c128_122] : memref<8x224xf32, #tpu.memory_space<vmem>>, vector<1x32xf32>
    tpu.vector_store %arg5[%c5, %c128_122], %206 {strides = array<i32>} : memref<8x224xf32, #tpu.memory_space<vmem>>, vector<1x32xf32>,
    %c1_i32_123 = arith.constant 1 : i32
    %208 = arith.addi %198, %c1_i32_123 : i32
    %209 = arith.index_cast %208 : i32 to index
    %210 = memref.load %arg1[%209] : memref<48xi32, #tpu.memory_space<smem>>
    %c0_i32_124 = arith.constant 0 : i32
    %c14_i32_125 = arith.constant 14 : i32
    %211 = arith.maxsi %c0_i32_124, %210 : i32
    %212 = arith.minsi %c14_i32_125, %211 : i32
    %213 = arith.index_cast %212 : i32 to index
    %c0_126 = arith.constant 0 : index
    %c0_127 = arith.constant 0 : index
    %214 = vector.load %arg4[%213, %c0_126, %c0_127] : memref<15x1x32xf32, #tpu.memory_space<vmem>>, vector<1x1x32xf32>
    %215 = vector.shape_cast %214 : vector<1x1x32xf32> to vector<1x32xf32>
    %c5_128 = arith.constant 5 : index
    %c160_129 = arith.constant 160 : index
    %216 = vector.load %arg5[%c5_128, %c160_129] : memref<8x224xf32, #tpu.memory_space<vmem>>, vector<1x32xf32>
    tpu.vector_store %arg5[%c5_128, %c160_129], %215 {strides = array<i32>} : memref<8x224xf32, #tpu.memory_space<vmem>>, vector<1x32xf32>,
    %c2_i32_130 = arith.constant 2 : i32
    %217 = arith.addi %198, %c2_i32_130 : i32
    %218 = arith.index_cast %217 : i32 to index
    %219 = memref.load %arg1[%218] : memref<48xi32, #tpu.memory_space<smem>>
    %c0_i32_131 = arith.constant 0 : i32
    %c14_i32_132 = arith.constant 14 : i32
    %220 = arith.maxsi %c0_i32_131, %219 : i32
    %221 = arith.minsi %c14_i32_132, %220 : i32
    %222 = arith.index_cast %221 : i32 to index
    %c0_133 = arith.constant 0 : index
    %c0_134 = arith.constant 0 : index
    %223 = vector.load %arg4[%222, %c0_133, %c0_134] : memref<15x1x32xf32, #tpu.memory_space<vmem>>, vector<1x1x32xf32>
    %224 = vector.shape_cast %223 : vector<1x1x32xf32> to vector<1x32xf32>
    %c5_135 = arith.constant 5 : index
    %c192_136 = arith.constant 192 : index
    %225 = vector.load %arg5[%c5_135, %c192_136] : memref<8x224xf32, #tpu.memory_space<vmem>>, vector<1x32xf32>
    tpu.vector_store %arg5[%c5_135, %c192_136], %224 {strides = array<i32>} : memref<8x224xf32, #tpu.memory_space<vmem>>, vector<1x32xf32>,
    %c8_i32_137 = arith.constant 8 : i32
    %226 = arith.muli %arg0, %c8_i32_137 : i32
    %c6_i32 = arith.constant 6 : i32
    %227 = arith.addi %226, %c6_i32 : i32
    %c3_i32_138 = arith.constant 3 : i32
    %228 = arith.muli %227, %c3_i32_138 : i32
    %c0_i32_139 = arith.constant 0 : i32
    %229 = arith.addi %228, %c0_i32_139 : i32
    %230 = arith.index_cast %229 : i32 to index
    %231 = memref.load %arg1[%230] : memref<48xi32, #tpu.memory_space<smem>>
    %c0_i32_140 = arith.constant 0 : i32
    %c14_i32_141 = arith.constant 14 : i32
    %232 = arith.maxsi %c0_i32_140, %231 : i32
    %233 = arith.minsi %c14_i32_141, %232 : i32
    %234 = arith.index_cast %233 : i32 to index
    %c0_142 = arith.constant 0 : index
    %c0_143 = arith.constant 0 : index
    %235 = vector.load %arg4[%234, %c0_142, %c0_143] : memref<15x1x32xf32, #tpu.memory_space<vmem>>, vector<1x1x32xf32>
    %236 = vector.shape_cast %235 : vector<1x1x32xf32> to vector<1x32xf32>
    %c6 = arith.constant 6 : index
    %c128_144 = arith.constant 128 : index
    %237 = vector.load %arg5[%c6, %c128_144] : memref<8x224xf32, #tpu.memory_space<vmem>>, vector<1x32xf32>
    tpu.vector_store %arg5[%c6, %c128_144], %236 {strides = array<i32>} : memref<8x224xf32, #tpu.memory_space<vmem>>, vector<1x32xf32>,
    %c1_i32_145 = arith.constant 1 : i32
    %238 = arith.addi %228, %c1_i32_145 : i32
    %239 = arith.index_cast %238 : i32 to index
    %240 = memref.load %arg1[%239] : memref<48xi32, #tpu.memory_space<smem>>
    %c0_i32_146 = arith.constant 0 : i32
    %c14_i32_147 = arith.constant 14 : i32
    %241 = arith.maxsi %c0_i32_146, %240 : i32
    %242 = arith.minsi %c14_i32_147, %241 : i32
    %243 = arith.index_cast %242 : i32 to index
    %c0_148 = arith.constant 0 : index
    %c0_149 = arith.constant 0 : index
    %244 = vector.load %arg4[%243, %c0_148, %c0_149] : memref<15x1x32xf32, #tpu.memory_space<vmem>>, vector<1x1x32xf32>
    %245 = vector.shape_cast %244 : vector<1x1x32xf32> to vector<1x32xf32>
    %c6_150 = arith.constant 6 : index
    %c160_151 = arith.constant 160 : index
    %246 = vector.load %arg5[%c6_150, %c160_151] : memref<8x224xf32, #tpu.memory_space<vmem>>, vector<1x32xf32>
    tpu.vector_store %arg5[%c6_150, %c160_151], %245 {strides = array<i32>} : memref<8x224xf32, #tpu.memory_space<vmem>>, vector<1x32xf32>,
    %c2_i32_152 = arith.constant 2 : i32
    %247 = arith.addi %228, %c2_i32_152 : i32
    %248 = arith.index_cast %247 : i32 to index
    %249 = memref.load %arg1[%248] : memref<48xi32, #tpu.memory_space<smem>>
    %c0_i32_153 = arith.constant 0 : i32
    %c14_i32_154 = arith.constant 14 : i32
    %250 = arith.maxsi %c0_i32_153, %249 : i32
    %251 = arith.minsi %c14_i32_154, %250 : i32
    %252 = arith.index_cast %251 : i32 to index
    %c0_155 = arith.constant 0 : index
    %c0_156 = arith.constant 0 : index
    %253 = vector.load %arg4[%252, %c0_155, %c0_156] : memref<15x1x32xf32, #tpu.memory_space<vmem>>, vector<1x1x32xf32>
    %254 = vector.shape_cast %253 : vector<1x1x32xf32> to vector<1x32xf32>
    %c6_157 = arith.constant 6 : index
    %c192_158 = arith.constant 192 : index
    %255 = vector.load %arg5[%c6_157, %c192_158] : memref<8x224xf32, #tpu.memory_space<vmem>>, vector<1x32xf32>
    tpu.vector_store %arg5[%c6_157, %c192_158], %254 {strides = array<i32>} : memref<8x224xf32, #tpu.memory_space<vmem>>, vector<1x32xf32>,
    %c8_i32_159 = arith.constant 8 : i32
    %256 = arith.muli %arg0, %c8_i32_159 : i32
    %c7_i32 = arith.constant 7 : i32
    %257 = arith.addi %256, %c7_i32 : i32
    %c3_i32_160 = arith.constant 3 : i32
    %258 = arith.muli %257, %c3_i32_160 : i32
    %c0_i32_161 = arith.constant 0 : i32
    %259 = arith.addi %258, %c0_i32_161 : i32
    %260 = arith.index_cast %259 : i32 to index
    %261 = memref.load %arg1[%260] : memref<48xi32, #tpu.memory_space<smem>>
    %c0_i32_162 = arith.constant 0 : i32
    %c14_i32_163 = arith.constant 14 : i32
    %262 = arith.maxsi %c0_i32_162, %261 : i32
    %263 = arith.minsi %c14_i32_163, %262 : i32
    %264 = arith.index_cast %263 : i32 to index
    %c0_164 = arith.constant 0 : index
    %c0_165 = arith.constant 0 : index
    %265 = vector.load %arg4[%264, %c0_164, %c0_165] : memref<15x1x32xf32, #tpu.memory_space<vmem>>, vector<1x1x32xf32>
    %266 = vector.shape_cast %265 : vector<1x1x32xf32> to vector<1x32xf32>
    %c7 = arith.constant 7 : index
    %c128_166 = arith.constant 128 : index
    %267 = vector.load %arg5[%c7, %c128_166] : memref<8x224xf32, #tpu.memory_space<vmem>>, vector<1x32xf32>
    tpu.vector_store %arg5[%c7, %c128_166], %266 {strides = array<i32>} : memref<8x224xf32, #tpu.memory_space<vmem>>, vector<1x32xf32>,
    %c1_i32_167 = arith.constant 1 : i32
    %268 = arith.addi %258, %c1_i32_167 : i32
    %269 = arith.index_cast %268 : i32 to index
    %270 = memref.load %arg1[%269] : memref<48xi32, #tpu.memory_space<smem>>
    %c0_i32_168 = arith.constant 0 : i32
    %c14_i32_169 = arith.constant 14 : i32
    %271 = arith.maxsi %c0_i32_168, %270 : i32
    %272 = arith.minsi %c14_i32_169, %271 : i32
    %273 = arith.index_cast %272 : i32 to index
    %c0_170 = arith.constant 0 : index
    %c0_171 = arith.constant 0 : index
    %274 = vector.load %arg4[%273, %c0_170, %c0_171] : memref<15x1x32xf32, #tpu.memory_space<vmem>>, vector<1x1x32xf32>
    %275 = vector.shape_cast %274 : vector<1x1x32xf32> to vector<1x32xf32>
    %c7_172 = arith.constant 7 : index
    %c160_173 = arith.constant 160 : index
    %276 = vector.load %arg5[%c7_172, %c160_173] : memref<8x224xf32, #tpu.memory_space<vmem>>, vector<1x32xf32>
    tpu.vector_store %arg5[%c7_172, %c160_173], %275 {strides = array<i32>} : memref<8x224xf32, #tpu.memory_space<vmem>>, vector<1x32xf32>,
    %c2_i32_174 = arith.constant 2 : i32
    %277 = arith.addi %258, %c2_i32_174 : i32
    %278 = arith.index_cast %277 : i32 to index
    %279 = memref.load %arg1[%278] : memref<48xi32, #tpu.memory_space<smem>>
    %c0_i32_175 = arith.constant 0 : i32
    %c14_i32_176 = arith.constant 14 : i32
    %280 = arith.maxsi %c0_i32_175, %279 : i32
    %281 = arith.minsi %c14_i32_176, %280 : i32
    %282 = arith.index_cast %281 : i32 to index
    %c0_177 = arith.constant 0 : index
    %c0_178 = arith.constant 0 : index
    %283 = vector.load %arg4[%282, %c0_177, %c0_178] : memref<15x1x32xf32, #tpu.memory_space<vmem>>, vector<1x1x32xf32>
    %284 = vector.shape_cast %283 : vector<1x1x32xf32> to vector<1x32xf32>
    %c7_179 = arith.constant 7 : index
    %c192_180 = arith.constant 192 : index
    %285 = vector.load %arg5[%c7_179, %c192_180] : memref<8x224xf32, #tpu.memory_space<vmem>>, vector<1x32xf32>
    tpu.vector_store %arg5[%c7_179, %c192_180], %284 {strides = array<i32>} : memref<8x224xf32, #tpu.memory_space<vmem>>, vector<1x32xf32>,
    return
  }
  func.func @transform_0(%arg0: i32, %arg1: memref<48xi32, #tpu.memory_space<smem>>) -> (i32, i32) {
    %c0_i32 = arith.constant 0 : i32
    %c0_i32_0 = arith.constant 0 : i32
    return %arg0, %c0_i32 : i32, i32
  }
  func.func @transform_1(%arg0: i32, %arg1: memref<48xi32, #tpu.memory_space<smem>>) -> (i32, i32, i32) {
    %c0_i32 = arith.constant 0 : i32
    %c0_i32_0 = arith.constant 0 : i32
    %c0_i32_1 = arith.constant 0 : i32
    %c0_i32_2 = arith.constant 0 : i32
    return %c0_i32, %c0_i32_0, %c0_i32_1 : i32, i32, i32
  }
  func.func @transform_2(%arg0: i32, %arg1: memref<48xi32, #tpu.memory_space<smem>>) -> (i32, i32, i32) {
    %c0_i32 = arith.constant 0 : i32
    %c0_i32_0 = arith.constant 0 : i32
    %c0_i32_1 = arith.constant 0 : i32
    %c0_i32_2 = arith.constant 0 : i32
    return %c0_i32, %c0_i32_0, %c0_i32_1 : i32, i32, i32
  }
  func.func @transform_3(%arg0: i32, %arg1: memref<48xi32, #tpu.memory_space<smem>>) -> (i32, i32) {
    %c0_i32 = arith.constant 0 : i32
    %c0_i32_0 = arith.constant 0 : i32
    return %arg0, %c0_i32 : i32, i32
  }
}

</mosaic_0001>

<llo_original>
// kernel: tpu_custom_call.1
$region0: #{tpu_custom_call.1}
  #allocation0 [shape = 'u32[]', space=smem, size = 0x4, offset = 0x4, fixed_abs, tag = 'smem constant byte address 0x4 - core index']
  #allocation1 [shape = 'u32[144,128]{1,0:T(1,128)}', space=vmem, size = 0x12000, scoped, tag = 'internal scratch']
  #allocation2 [shape = 's32[1]{0}', space=sflag, size = 0x4, scoped, tag = 'scoped memory for tpu_custom_call.1']
  #allocation3 [shape = 'u8[512]{0}', space=smem, size = 0x200, scoped, tag = 'prefetched SMEM operand 0']
  %s0 = inlined_call_operand.vmem [shape: s32[48], index: 0, kind: input, shape index: {}]
  %s1 = inlined_call_operand.vmem [shape: f32[16,4], index: 1, kind: input, shape index: {}]
  %s2 = inlined_call_operand.vmem [shape: f32[2,4,32], index: 2, kind: input, shape index: {}]
  %s3 = inlined_call_operand.vmem [shape: f32[15,1,32], index: 3, kind: input, shape index: {}]
  %s4 = inlined_call_operand.hbm [shape: f32[16,224], index: 4, kind: output, shape index: {}]
  %s5 = sld [smem:[#allocation0]]
  $region45: #{tpu_custom_call.1} parent=0
    _
  %s7 = ssub.s32 1, %s5
  %s8 = scalar_select 0, %s7, %s5
  %s9 = sshll.u32 %s0, 4
  %s10 = int_to_ptr.vmem [resolvable:$true] %s9
  %12 = dma.vmem_to_smem %s10, 16, [#allocation3], [#allocation2]
  %13 = dma.done [#allocation2], 16
  %14 = sfence
  $region1: #{tpu_custom_call.1} parent=0
    #allocation4 [shape = 'u8[16384]{0}', space=vmem, size = 0x4000, scoped, tag = 'output window, operand 0']
    #allocation5 [shape = 's32[2]{0}', space=sflag, size = 0x8, scoped, tag = 'scoped memory for tpu_custom_call.1']
    %15 = vsyncpa [#allocation5], 0
    %s16 = scalar_lea.sflag [#allocation5], 1
    %17 = vsyncpa %s16, 0
    loop: start=0, step=1, limit=4
    $region2: #{tpu_custom_call.1} parent=1 // loop_pre_header
      _
    $region3: #{tpu_custom_call.1} parent=1 // loop_header
      %s19 = sphi 0, %s23
      %p20 = scmp.ge.s32.totalorder %s19, 4
      %s29 = sphi 0, %s31
      %s32 = sphi 0, %s29
      %s33 = sphi 0, %s32
      %s49 = sphi 0, %s33
      %s53 = sphi 0, %s53
      %s55 = sphi 0, %s53
      %s56 = sphi 0, %s55
      %s70 = sphi 0, %s56
      %s74 = sphi 0, %s74
      %s76 = sphi 0, %s74
      %s77 = sphi 0, %s76
      %s91 = sphi 0, %s77
      %s97 = sphi 0, %s99
      %s100 = sphi 0, %s97
      %s101 = sphi 0, %s100
      %s117 = sphi 0, %s101
    $region4: #{tpu_custom_call.1} parent=1 // loop_header_branch
      %22 = sbr.rel (%p20) target = $region8
    $region5: #{tpu_custom_call.1} parent=1 // loop_body
      %s24 = ssub.s32 %s19, 1
      %s25 = ssub.s32 %s19, 2
      %s26 = sadd.s32 %s19, 1
      %s27 = ssub.s32 %s19, %s26
      %p28 = scmp.eq.s32.totalorder %s27, 0
      %s30 = sadd.s32 %s29, 1
      %s31 = scalar_select %p28, %s29, %s30
      %p34 = pneg %p28
      %p35 = scmp.eq.s32.totalorder %s19, 1
      %p36 = por %p34, %p35
      %p37 = scmp.ne.s32.totalorder %s29, %s32
      %p38 = scmp.eq.s32.totalorder %s19, 0
      %p39 = por %p37, %p38
      %p40 = scmp.ne.s32.totalorder %s29, %s32
      %p41 = scmp.eq.s32.totalorder %s24, 1
      %p42 = por %p40, %p41
      %p43 = scmp.ne.s32.totalorder %s32, %s33
      %p44 = scmp.eq.s32.totalorder %s24, 0
      %p45 = por %p43, %p44
      %p46 = scmp.ne.s32.totalorder %s32, %s33
      %p47 = scmp.eq.s32.totalorder %s25, 1
      %p48 = por %p46, %p47
      %p50 = scmp.ne.s32.totalorder %s33, %s49
      %p51 = scmp.eq.s32.totalorder %s25, 0
      %p52 = por %p50, %p51
      %s54 = sadd.s32 %s53, 1
      %p57 = scmp.eq.s32.totalorder %s19, 1
      %p58 = scmp.ne.s32.totalorder %s53, %s55
      %p59 = scmp.eq.s32.totalorder %s19, 0
      %p60 = por %p58, %p59
      %p61 = scmp.ne.s32.totalorder %s53, %s55
      %p62 = scmp.eq.s32.totalorder %s24, 1
      %p63 = por %p61, %p62
      %p64 = scmp.ne.s32.totalorder %s55, %s56
      %p65 = scmp.eq.s32.totalorder %s24, 0
      %p66 = por %p64, %p65
      %p67 = scmp.ne.s32.totalorder %s55, %s56
      %p68 = scmp.eq.s32.totalorder %s25, 1
      %p69 = por %p67, %p68
      %p71 = scmp.ne.s32.totalorder %s56, %s70
      %p72 = scmp.eq.s32.totalorder %s25, 0
      %p73 = por %p71, %p72
      %s75 = sadd.s32 %s74, 1
      %p78 = scmp.eq.s32.totalorder %s19, 1
      %p79 = scmp.ne.s32.totalorder %s74, %s76
      %p80 = scmp.eq.s32.totalorder %s19, 0
      %p81 = por %p79, %p80
      %p82 = scmp.ne.s32.totalorder %s74, %s76
      %p83 = scmp.eq.s32.totalorder %s24, 1
      %p84 = por %p82, %p83
      %p85 = scmp.ne.s32.totalorder %s76, %s77
      %p86 = scmp.eq.s32.totalorder %s24, 0
      %p87 = por %p85, %p86
      %p88 = scmp.ne.s32.totalorder %s76, %s77
      %p89 = scmp.eq.s32.totalorder %s25, 1
      %p90 = por %p88, %p89
      %p92 = scmp.ne.s32.totalorder %s77, %s91
      %p93 = scmp.eq.s32.totalorder %s25, 0
      %p94 = por %p92, %p93
      %s95 = ssub.s32 %s19, %s26
      %p96 = scmp.eq.s32.totalorder %s95, 0
      %s98 = sadd.s32 %s97, 1
      %s99 = scalar_select %p96, %s97, %s98
      %p102 = pneg %p96
      %p103 = scmp.eq.s32.totalorder %s19, 1
      %p104 = por %p102, %p103
      %p105 = scmp.ne.s32.totalorder %s97, %s100
      %p106 = scmp.eq.s32.totalorder %s19, 0
      %p107 = por %p105, %p106
      %p108 = scmp.ne.s32.totalorder %s97, %s100
      %p109 = scmp.eq.s32.totalorder %s24, 1
      %p110 = por %p108, %p109
      %p111 = scmp.ne.s32.totalorder %s100, %s101
      %p112 = scmp.eq.s32.totalorder %s24, 0
      %p113 = por %p111, %p112
      %p114 = scmp.ne.s32.totalorder %s100, %s101
      %p115 = scmp.eq.s32.totalorder %s25, 1
      %p116 = por %p114, %p115
      %p118 = scmp.ne.s32.totalorder %s101, %s117
      %p119 = scmp.eq.s32.totalorder %s25, 0
      %p120 = por %p118, %p119
      %p121 = scmp.le.s32.totalorder 1, %s19
      %p122 = scmp.lt.s32.totalorder %s19, 3
      %p123 = pnand %p121, %p122
      %p124 = pneg %p123
      // Predicated region
      $region9: #{tpu_custom_call.1} parent=5 // pred_check
        _
      $region10: #{tpu_custom_call.1} parent=5 // pred_check_branch
        %126 = sbr.rel (%p123) target = $region12
      $region11: #{tpu_custom_call.1} parent=5 // pred_region
        %s127 = ssub.s32 %s19, 1
        // Predicated region
        $region13: #{tpu_custom_call.1} parent=11 // pred_check
          %p128 = pneg %p66
        $region14: #{tpu_custom_call.1} parent=11 // pred_check_branch
          %130 = sbr.rel (%p128) target = $region16
        $region15: #{tpu_custom_call.1} parent=11 // pred_region
          _
        $region16: #{tpu_custom_call.1} parent=11 // pred_fallthru
          _
        // Predicated region
        $region17: #{tpu_custom_call.1} parent=11 // pred_check
          %p131 = pneg %p87
        $region18: #{tpu_custom_call.1} parent=11 // pred_check_branch
          %133 = sbr.rel (%p131) target = $region20
        $region19: #{tpu_custom_call.1} parent=11 // pred_region
          _
        $region20: #{tpu_custom_call.1} parent=11 // pred_fallthru
          _
      $region12: #{tpu_custom_call.1} parent=5 // pred_fallthru
        _
      %p134 = scmp.lt.s32.totalorder %s19, 2
      // Predicated region
      $region21: #{tpu_custom_call.1} parent=5 // pred_check
        %p135 = pneg %p134
      $region22: #{tpu_custom_call.1} parent=5 // pred_check_branch
        %137 = sbr.rel (%p135) target = $region24
      $region23: #{tpu_custom_call.1} parent=5 // pred_region
        // Predicated region
        $region25: #{tpu_custom_call.1} parent=23 // pred_check
          %p138 = pneg %p39
        $region26: #{tpu_custom_call.1} parent=23 // pred_check_branch
          %140 = sbr.rel (%p138) target = $region28
        $region27: #{tpu_custom_call.1} parent=23 // pred_region
          %p141 = scmp.lt.s32.totalorder %s19, 1
          %s142 = scalar_select %p141, %s19, 1
          %s143 = smul.addr %s142, 8
          %s144 = scalar_lea.vmem %s1, %s143
        $region28: #{tpu_custom_call.1} parent=23 // pred_fallthru
          _
      $region24: #{tpu_custom_call.1} parent=5 // pred_fallthru
        _
      %p145 = scmp.le.s32.totalorder 1, %s19
      %p146 = scmp.lt.s32.totalorder %s19, 3
      %p147 = pnand %p145, %p146
      %p148 = pneg %p147
      // Predicated region
      $region29: #{tpu_custom_call.1} parent=5 // pred_check
        _
      $region30: #{tpu_custom_call.1} parent=5 // pred_check_branch
        %150 = sbr.rel (%p147) target = $region32
      $region31: #{tpu_custom_call.1} parent=5 // pred_region
        %s151 = ssub.s32 %s19, 1
        %p152 = scmp.lt.s32.totalorder %s24, 1
        %s153 = scalar_select %p152, %s24, 1
        %s154 = smul.addr %s153, 8
        %s155 = scalar_lea.vmem %s1, %s154
        %p156 = pneg %p45
        %p157 = pneg %p42
        %p158 = pneg %p66
        %p159 = pneg %p63
        %p160 = pneg %p87
        %p161 = pneg %p84
        %p162 = pneg %p113
        %p163 = pneg %p110
        %s164 = sand.u32 %s100, 1
        %s165 = scalar_lea.sflag [#allocation5], %s164
        %s166 = sand.u32 %s100, 1
        %s167 = smul.addr %s166, 16
        %s168 = scalar_lea.vmem [#allocation4], %s167
        %p169 = scmp.lt.s32.totalorder %s24, 1
        %s170 = scalar_select %p169, %s24, 1
        %s171 = smul.addr %s170, 8
        %s172 = scalar_lea.vmem %s1, %s171
        %v173 = vld [vmem:[%s172] sm:$0xff]
        %v174 = vld [vmem:[%s2] sm:$0xf]
        %v175 = vld [vmem:[%s2 + $0x4] sm:$0xf]
        %177 = vset.pattern.permute.xlu0 0
        %178 = vperm.xlu0 %177, %v173
        %v179 = vpop.permute.xlu0 %178
        %v181 = vlaneseq
        %v182 = vshrl.u32 %v181, 7
        %v183 = vsub.s32 0, %v182
        %v184 = vrot.slane %v174, %v183
        %v185 = vmul.f32 %v179, %v184
        %v186 = vlaneseq
        %v187 = vshrl.u32 %v186, 7
        %v188 = vsub.s32 0, %v187
        %v189 = vrot.slane %v175, %v188
        %v190 = vadd.f32 %v185, %v189
        %vm191 = vcmask 261120
        %192 = vst.msk [vmem:[%s168] sm:$0xff] %vm191, %v190
        %193 = vset.pattern.permute.xlu0 1
        %194 = vperm.xlu0 %193, %v173
        %v195 = vpop.permute.xlu0 %194
        %v197 = vlaneseq
        %v198 = vshrl.u32 %v197, 7
        %v199 = vsub.s32 1, %v198
        %v200 = vrot.slane %v174, %v199
        %v201 = vmul.f32 %v195, %v200
        %v202 = vlaneseq
        %v203 = vshrl.u32 %v202, 7
        %v204 = vsub.s32 1, %v203
        %v205 = vrot.slane %v175, %v204
        %v206 = vadd.f32 %v201, %v205
        %208 = vrot.lane.b32.xlu0 %v206, 32
        %v209 = vpop.permute.xlu0 %208
        %vm211 = vcmask 523520
        %212 = vst.msk [vmem:[%s168] sm:$0xff] %vm211, %v209
        %213 = vset.pattern.permute.xlu0 2
        %214 = vperm.xlu0 %213, %v173
        %v215 = vpop.permute.xlu0 %214
        %v217 = vlaneseq
        %v218 = vshrl.u32 %v217, 7
        %v219 = vsub.s32 2, %v218
        %v220 = vrot.slane %v174, %v219
        %v221 = vmul.f32 %v215, %v220
        %v222 = vlaneseq
        %v223 = vshrl.u32 %v222, 7
        %v224 = vsub.s32 2, %v223
        %v225 = vrot.slane %v175, %v224
        %v226 = vadd.f32 %v221, %v225
        %228 = vrot.lane.b32.xlu0 %v226, 64
        %v229 = vpop.permute.xlu0 %228
        %vm231 = vcmask 785920
        %232 = vst.msk [vmem:[%s168] sm:$0xff] %vm231, %v229
        %233 = vset.pattern.permute.xlu0 3
        %234 = vperm.xlu0 %233, %v173
        %v235 = vpop.permute.xlu0 %234
        %v237 = vlaneseq
        %v238 = vshrl.u32 %v237, 7
        %v239 = vsub.s32 3, %v238
        %v240 = vrot.slane %v174, %v239
        %v241 = vmul.f32 %v235, %v240
        %v242 = vlaneseq
        %v243 = vshrl.u32 %v242, 7
        %v244 = vsub.s32 3, %v243
        %v245 = vrot.slane %v175, %v244
        %v246 = vadd.f32 %v241, %v245
        %248 = vrot.lane.b32.xlu0 %v246, 96
        %v249 = vpop.permute.xlu0 %248
        %vm251 = vcmask 1048320
        %252 = vst.msk [vmem:[%s168] sm:$0xff] %vm251, %v249
        %s253 = smul.u32 %s24, 24
        %s254 = sld [smem:[#allocation3 + %s253]]
        %p255 = scmp.gt.s32.totalorder %s254, 0
        %s256 = scalar_select %p255, %s254, 0
        %p257 = scmp.lt.s32.totalorder %s256, 14
        %s258 = scalar_select %p257, %s256, 14
        %s259 = scalar_lea.vmem %s3, %s258
        %v260 = vld [vmem:[%s259] sm:$0x1]
        %vm261 = vcmask 253952
        %262 = vst.msk [vmem:[%s168 + $0x8] sm:$0x1] %vm261, %v260
        %s263 = sadd.s32 %s253, 1
        %s264 = sld [smem:[#allocation3 + %s263]]
        %p265 = scmp.gt.s32.totalorder %s264, 0
        %s266 = scalar_select %p265, %s264, 0
        %p267 = scmp.lt.s32.totalorder %s266, 14
        %s268 = scalar_select %p267, %s266, 14
        %s269 = scalar_lea.vmem %s3, %s268
        %v270 = vld [vmem:[%s269] sm:$0x1]
        %v272 = vlaneseq
        %v273 = vshrl.u32 %v272, 7
        %v274 = vsub.s32 0, %v273
        %v275 = vrot.slane %v270, %v274
        %276 = vrot.lane.b32.xlu0 %v275, 32
        %v277 = vpop.permute.xlu0 %276
        %vm279 = vcmask 516352
        %280 = vst.msk [vmem:[%s168 + $0x8] sm:$0x1] %vm279, %v277
        %s281 = sadd.s32 %s253, 2
        %s282 = sld [smem:[#allocation3 + %s281]]
        %p283 = scmp.gt.s32.totalorder %s282, 0
        %s284 = scalar_select %p283, %s282, 0
        %p285 = scmp.lt.s32.totalorder %s284, 14
        %s286 = scalar_select %p285, %s284, 14
        %s287 = scalar_lea.vmem %s3, %s286
        %v288 = vld [vmem:[%s287] sm:$0x1]
        %v290 = vlaneseq
        %v291 = vshrl.u32 %v290, 7
        %v292 = vsub.s32 0, %v291
        %v293 = vrot.slane %v288, %v292
        %294 = vrot.lane.b32.xlu0 %v293, 64
        %v295 = vpop.permute.xlu0 %294
        %vm297 = vcmask 778752
        %298 = vst.msk [vmem:[%s168 + $0x8] sm:$0x1] %vm297, %v295
        %s299 = smul.u32 %s24, 8
        %s300 = sadd.s32 %s299, 1
        %s301 = smul.u32 %s300, 3
        %s302 = sld [smem:[#allocation3 + %s301]]
        %p303 = scmp.gt.s32.totalorder %s302, 0
        %s304 = scalar_select %p303, %s302, 0
        %p305 = scmp.lt.s32.totalorder %s304, 14
        %s306 = scalar_select %p305, %s304, 14
        %s307 = scalar_lea.vmem %s3, %s306
        %v308 = vld [vmem:[%s307] sm:$0x1]
        %309 = vst.msk [vmem:[%s168 + $0x9] sm:$0x1] %vm261, %v308
        %s310 = sadd.s32 %s301, 1
        %s311 = sld [smem:[#allocation3 + %s310]]
        %p312 = scmp.gt.s32.totalorder %s311, 0
        %s313 = scalar_select %p312, %s311, 0
        %p314 = scmp.lt.s32.totalorder %s313, 14
        %s315 = scalar_select %p314, %s313, 14
        %s316 = scalar_lea.vmem %s3, %s315
        %v317 = vld [vmem:[%s316] sm:$0x1]
        %v319 = vlaneseq
        %v320 = vshrl.u32 %v319, 7
        %v321 = vsub.s32 0, %v320
        %v322 = vrot.slane %v317, %v321
        %323 = vrot.lane.b32.xlu0 %v322, 32
        %v324 = vpop.permute.xlu0 %323
        %326 = vst.msk [vmem:[%s168 + $0x9] sm:$0x1] %vm279, %v324
        %s327 = sadd.s32 %s301, 2
        %s328 = sld [smem:[#allocation3 + %s327]]
        %p329 = scmp.gt.s32.totalorder %s328, 0
        %s330 = scalar_select %p329, %s328, 0
        %p331 = scmp.lt.s32.totalorder %s330, 14
        %s332 = scalar_select %p331, %s330, 14
        %s333 = scalar_lea.vmem %s3, %s332
        %v334 = vld [vmem:[%s333] sm:$0x1]
        %v336 = vlaneseq
        %v337 = vshrl.u32 %v336, 7
        %v338 = vsub.s32 0, %v337
        %v339 = vrot.slane %v334, %v338
        %340 = vrot.lane.b32.xlu0 %v339, 64
        %v341 = vpop.permute.xlu0 %340
        %343 = vst.msk [vmem:[%s168 + $0x9] sm:$0x1] %vm297, %v341
        %s344 = sadd.s32 %s299, 2
        %s345 = smul.u32 %s344, 3
        %s346 = sld [smem:[#allocation3 + %s345]]
        %p347 = scmp.gt.s32.totalorder %s346, 0
        %s348 = scalar_select %p347, %s346, 0
        %p349 = scmp.lt.s32.totalorder %s348, 14
        %s350 = scalar_select %p349, %s348, 14
        %s351 = scalar_lea.vmem %s3, %s350
        %v352 = vld [vmem:[%s351] sm:$0x1]
        %353 = vst.msk [vmem:[%s168 + $0xa] sm:$0x1] %vm261, %v352
        %s354 = sadd.s32 %s345, 1
        %s355 = sld [smem:[#allocation3 + %s354]]
        %p356 = scmp.gt.s32.totalorder %s355, 0
        %s357 = scalar_select %p356, %s355, 0
        %p358 = scmp.lt.s32.totalorder %s357, 14
        %s359 = scalar_select %p358, %s357, 14
        %s360 = scalar_lea.vmem %s3, %s359
        %v361 = vld [vmem:[%s360] sm:$0x1]
        %v363 = vlaneseq
        %v364 = vshrl.u32 %v363, 7
        %v365 = vsub.s32 0, %v364
        %v366 = vrot.slane %v361, %v365
        %367 = vrot.lane.b32.xlu0 %v366, 32
        %v368 = vpop.permute.xlu0 %367
        %370 = vst.msk [vmem:[%s168 + $0xa] sm:$0x1] %vm279, %v368
        %s371 = sadd.s32 %s345, 2
        %s372 = sld [smem:[#allocation3 + %s371]]
        %p373 = scmp.gt.s32.totalorder %s372, 0
        %s374 = scalar_select %p373, %s372, 0
        %p375 = scmp.lt.s32.totalorder %s374, 14
        %s376 = scalar_select %p375, %s374, 14
        %s377 = scalar_lea.vmem %s3, %s376
        %v378 = vld [vmem:[%s377] sm:$0x1]
        %v380 = vlaneseq
        %v381 = vshrl.u32 %v380, 7
        %v382 = vsub.s32 0, %v381
        %v383 = vrot.slane %v378, %v382
        %384 = vrot.lane.b32.xlu0 %v383, 64
        %v385 = vpop.permute.xlu0 %384
        %387 = vst.msk [vmem:[%s168 + $0xa] sm:$0x1] %vm297, %v385
        %s388 = sadd.s32 %s299, 3
        %s389 = smul.u32 %s388, 3
        %s390 = sld [smem:[#allocation3 + %s389]]
        %p391 = scmp.gt.s32.totalorder %s390, 0
        %s392 = scalar_select %p391, %s390, 0
        %p393 = scmp.lt.s32.totalorder %s392, 14
        %s394 = scalar_select %p393, %s392, 14
        %s395 = scalar_lea.vmem %s3, %s394
        %v396 = vld [vmem:[%s395] sm:$0x1]
        %397 = vst.msk [vmem:[%s168 + $0xb] sm:$0x1] %vm261, %v396
        %s398 = sadd.s32 %s389, 1
        %s399 = sld [smem:[#allocation3 + %s398]]
        %p400 = scmp.gt.s32.totalorder %s399, 0
        %s401 = scalar_select %p400, %s399, 0
        %p402 = scmp.lt.s32.totalorder %s401, 14
        %s403 = scalar_select %p402, %s401, 14
        %s404 = scalar_lea.vmem %s3, %s403
        %v405 = vld [vmem:[%s404] sm:$0x1]
        %v407 = vlaneseq
        %v408 = vshrl.u32 %v407, 7
        %v409 = vsub.s32 0, %v408
        %v410 = vrot.slane %v405, %v409
        %411 = vrot.lane.b32.xlu0 %v410, 32
        %v412 = vpop.permute.xlu0 %411
        %414 = vst.msk [vmem:[%s168 + $0xb] sm:$0x1] %vm279, %v412
        %s415 = sadd.s32 %s389, 2
        %s416 = sld [smem:[#allocation3 + %s415]]
        %p417 = scmp.gt.s32.totalorder %s416, 0
        %s418 = scalar_select %p417, %s416, 0
        %p419 = scmp.lt.s32.totalorder %s418, 14
        %s420 = scalar_select %p419, %s418, 14
        %s421 = scalar_lea.vmem %s3, %s420
        %v422 = vld [vmem:[%s421] sm:$0x1]
        %v424 = vlaneseq
        %v425 = vshrl.u32 %v424, 7
        %v426 = vsub.s32 0, %v425
        %v427 = vrot.slane %v422, %v426
        %428 = vrot.lane.b32.xlu0 %v427, 64
        %v429 = vpop.permute.xlu0 %428
        %431 = vst.msk [vmem:[%s168 + $0xb] sm:$0x1] %vm297, %v429
        %s432 = sadd.s32 %s299, 4
        %s433 = smul.u32 %s432, 3
        %s434 = sld [smem:[#allocation3 + %s433]]
        %p435 = scmp.gt.s32.totalorder %s434, 0
        %s436 = scalar_select %p435, %s434, 0
        %p437 = scmp.lt.s32.totalorder %s436, 14
        %s438 = scalar_select %p437, %s436, 14
        %s439 = scalar_lea.vmem %s3, %s438
        %v440 = vld [vmem:[%s439] sm:$0x1]
        %441 = vst.msk [vmem:[%s168 + $0xc] sm:$0x1] %vm261, %v440
        %s442 = sadd.s32 %s433, 1
        %s443 = sld [smem:[#allocation3 + %s442]]
        %p444 = scmp.gt.s32.totalorder %s443, 0
        %s445 = scalar_select %p444, %s443, 0
        %p446 = scmp.lt.s32.totalorder %s445, 14
        %s447 = scalar_select %p446, %s445, 14
        %s448 = scalar_lea.vmem %s3, %s447
        %v449 = vld [vmem:[%s448] sm:$0x1]
        %v451 = vlaneseq
        %v452 = vshrl.u32 %v451, 7
        %v453 = vsub.s32 0, %v452
        %v454 = vrot.slane %v449, %v453
        %455 = vrot.lane.b32.xlu0 %v454, 32
        %v456 = vpop.permute.xlu0 %455
        %458 = vst.msk [vmem:[%s168 + $0xc] sm:$0x1] %vm279, %v456
        %s459 = sadd.s32 %s433, 2
        %s460 = sld [smem:[#allocation3 + %s459]]
        %p461 = scmp.gt.s32.totalorder %s460, 0
        %s462 = scalar_select %p461, %s460, 0
        %p463 = scmp.lt.s32.totalorder %s462, 14
        %s464 = scalar_select %p463, %s462, 14
        %s465 = scalar_lea.vmem %s3, %s464
        %v466 = vld [vmem:[%s465] sm:$0x1]
        %v468 = vlaneseq
        %v469 = vshrl.u32 %v468, 7
        %v470 = vsub.s32 0, %v469
        %v471 = vrot.slane %v466, %v470
        %472 = vrot.lane.b32.xlu0 %v471, 64
        %v473 = vpop.permute.xlu0 %472
        %475 = vst.msk [vmem:[%s168 + $0xc] sm:$0x1] %vm297, %v473
        %s476 = sadd.s32 %s299, 5
        %s477 = smul.u32 %s476, 3
        %s478 = sld [smem:[#allocation3 + %s477]]
        %p479 = scmp.gt.s32.totalorder %s478, 0
        %s480 = scalar_select %p479, %s478, 0
        %p481 = scmp.lt.s32.totalorder %s480, 14
        %s482 = scalar_select %p481, %s480, 14
        %s483 = scalar_lea.vmem %s3, %s482
        %v484 = vld [vmem:[%s483] sm:$0x1]
        %485 = vst.msk [vmem:[%s168 + $0xd] sm:$0x1] %vm261, %v484
        %s486 = sadd.s32 %s477, 1
        %s487 = sld [smem:[#allocation3 + %s486]]
        %p488 = scmp.gt.s32.totalorder %s487, 0
        %s489 = scalar_select %p488, %s487, 0
        %p490 = scmp.lt.s32.totalorder %s489, 14
        %s491 = scalar_select %p490, %s489, 14
        %s492 = scalar_lea.vmem %s3, %s491
        %v493 = vld [vmem:[%s492] sm:$0x1]
        %v495 = vlaneseq
        %v496 = vshrl.u32 %v495, 7
        %v497 = vsub.s32 0, %v496
        %v498 = vrot.slane %v493, %v497
        %499 = vrot.lane.b32.xlu0 %v498, 32
        %v500 = vpop.permute.xlu0 %499
        %502 = vst.msk [vmem:[%s168 + $0xd] sm:$0x1] %vm279, %v500
        %s503 = sadd.s32 %s477, 2
        %s504 = sld [smem:[#allocation3 + %s503]]
        %p505 = scmp.gt.s32.totalorder %s504, 0
        %s506 = scalar_select %p505, %s504, 0
        %p507 = scmp.lt.s32.totalorder %s506, 14
        %s508 = scalar_select %p507, %s506, 14
        %s509 = scalar_lea.vmem %s3, %s508
        %v510 = vld [vmem:[%s509] sm:$0x1]
        %v512 = vlaneseq
        %v513 = vshrl.u32 %v512, 7
        %v514 = vsub.s32 0, %v513
        %v515 = vrot.slane %v510, %v514
        %516 = vrot.lane.b32.xlu0 %v515, 64
        %v517 = vpop.permute.xlu0 %516
        %519 = vst.msk [vmem:[%s168 + $0xd] sm:$0x1] %vm297, %v517
        %s520 = sadd.s32 %s299, 6
        %s521 = smul.u32 %s520, 3
        %s522 = sld [smem:[#allocation3 + %s521]]
        %p523 = scmp.gt.s32.totalorder %s522, 0
        %s524 = scalar_select %p523, %s522, 0
        %p525 = scmp.lt.s32.totalorder %s524, 14
        %s526 = scalar_select %p525, %s524, 14
        %s527 = scalar_lea.vmem %s3, %s526
        %v528 = vld [vmem:[%s527] sm:$0x1]
        %529 = vst.msk [vmem:[%s168 + $0xe] sm:$0x1] %vm261, %v528
        %s530 = sadd.s32 %s521, 1
        %s531 = sld [smem:[#allocation3 + %s530]]
        %p532 = scmp.gt.s32.totalorder %s531, 0
        %s533 = scalar_select %p532, %s531, 0
        %p534 = scmp.lt.s32.totalorder %s533, 14
        %s535 = scalar_select %p534, %s533, 14
        %s536 = scalar_lea.vmem %s3, %s535
        %v537 = vld [vmem:[%s536] sm:$0x1]
        %v539 = vlaneseq
        %v540 = vshrl.u32 %v539, 7
        %v541 = vsub.s32 0, %v540
        %v542 = vrot.slane %v537, %v541
        %543 = vrot.lane.b32.xlu0 %v542, 32
        %v544 = vpop.permute.xlu0 %543
        %546 = vst.msk [vmem:[%s168 + $0xe] sm:$0x1] %vm279, %v544
        %s547 = sadd.s32 %s521, 2
        %s548 = sld [smem:[#allocation3 + %s547]]
        %p549 = scmp.gt.s32.totalorder %s548, 0
        %s550 = scalar_select %p549, %s548, 0
        %p551 = scmp.lt.s32.totalorder %s550, 14
        %s552 = scalar_select %p551, %s550, 14
        %s553 = scalar_lea.vmem %s3, %s552
        %v554 = vld [vmem:[%s553] sm:$0x1]
        %v556 = vlaneseq
        %v557 = vshrl.u32 %v556, 7
        %v558 = vsub.s32 0, %v557
        %v559 = vrot.slane %v554, %v558
        %560 = vrot.lane.b32.xlu0 %v559, 64
        %v561 = vpop.permute.xlu0 %560
        %563 = vst.msk [vmem:[%s168 + $0xe] sm:$0x1] %vm297, %v561
        %s564 = sadd.s32 %s299, 7
        %s565 = smul.u32 %s564, 3
        %s566 = sld [smem:[#allocation3 + %s565]]
        %p567 = scmp.gt.s32.totalorder %s566, 0
        %s568 = scalar_select %p567, %s566, 0
        %p569 = scmp.lt.s32.totalorder %s568, 14
        %s570 = scalar_select %p569, %s568, 14
        %s571 = scalar_lea.vmem %s3, %s570
        %v572 = vld [vmem:[%s571] sm:$0x1]
        %573 = vst.msk [vmem:[%s168 + $0xf] sm:$0x1] %vm261, %v572
        %s574 = sadd.s32 %s565, 1
        %s575 = sld [smem:[#allocation3 + %s574]]
        %p576 = scmp.gt.s32.totalorder %s575, 0
        %s577 = scalar_select %p576, %s575, 0
        %p578 = scmp.lt.s32.totalorder %s577, 14
        %s579 = scalar_select %p578, %s577, 14
        %s580 = scalar_lea.vmem %s3, %s579
        %v581 = vld [vmem:[%s580] sm:$0x1]
        %v583 = vlaneseq
        %v584 = vshrl.u32 %v583, 7
        %v585 = vsub.s32 0, %v584
        %v586 = vrot.slane %v581, %v585
        %587 = vrot.lane.b32.xlu0 %v586, 32
        %v588 = vpop.permute.xlu0 %587
        %590 = vst.msk [vmem:[%s168 + $0xf] sm:$0x1] %vm279, %v588
        %s591 = sadd.s32 %s565, 2
        %s592 = sld [smem:[#allocation3 + %s591]]
        %p593 = scmp.gt.s32.totalorder %s592, 0
        %s594 = scalar_select %p593, %s592, 0
        %p595 = scmp.lt.s32.totalorder %s594, 14
        %s596 = scalar_select %p595, %s594, 14
        %s597 = scalar_lea.vmem %s3, %s596
        %v598 = vld [vmem:[%s597] sm:$0x1]
        %v600 = vlaneseq
        %v601 = vshrl.u32 %v600, 7
        %v602 = vsub.s32 0, %v601
        %v603 = vrot.slane %v598, %v602
        %604 = vrot.lane.b32.xlu0 %v603, 64
        %v605 = vpop.permute.xlu0 %604
        %607 = vst.msk [vmem:[%s168 + $0xf] sm:$0x1] %vm297, %v605
        %s608 = sand.u32 %s100, 1
        %s609 = scalar_lea.sflag [#allocation5], %s608
        %s610 = sand.u32 %s100, 1
        %s611 = smul.addr %s610, 16
        %s612 = scalar_lea.vmem [#allocation4], %s611
        // Predicated region
        $region33: #{tpu_custom_call.1} parent=31 // pred_check
          %p613 = pneg %p110
        $region34: #{tpu_custom_call.1} parent=31 // pred_check_branch
          %615 = sbr.rel (%p613) target = $region36
        $region35: #{tpu_custom_call.1} parent=31 // pred_region
          %s617 = ssub.s32 256, 256
          %618 = vsyncadd %s609, %s617
          %s619 = smul.addr %s24, 2
          %s620 = smul.addr %s619, 128
          %s621 = scalar_lea.hbm %s4, %s620
          %s623 = sshll.u32 %s612, 4
          %s624 = int_to_ptr.vmem [resolvable:$true] %s623
          %626 = dma.vmem_to_hbm [thread:$0]  %s624, 256, %s621, %s609
        $region36: #{tpu_custom_call.1} parent=31 // pred_fallthru
          _
      $region32: #{tpu_custom_call.1} parent=5 // pred_fallthru
        _
      %p627 = scmp.le.s32.totalorder 2, %s19
      // Predicated region
      $region37: #{tpu_custom_call.1} parent=5 // pred_check
        %p628 = pneg %p627
      $region38: #{tpu_custom_call.1} parent=5 // pred_check_branch
        %630 = sbr.rel (%p628) target = $region40
      $region39: #{tpu_custom_call.1} parent=5 // pred_region
        %s631 = ssub.s32 %s19, 2
        // Predicated region
        $region41: #{tpu_custom_call.1} parent=39 // pred_check
          %p632 = pneg %p116
        $region42: #{tpu_custom_call.1} parent=39 // pred_check_branch
          %634 = sbr.rel (%p632) target = $region44
        $region43: #{tpu_custom_call.1} parent=39 // pred_region
          %s635 = sand.u32 %s101, 1
          %s636 = scalar_lea.sflag [#allocation5], %s635
          %s637 = sand.u32 %s101, 1
          %s638 = smul.addr %s637, 16
          %s639 = scalar_lea.vmem [#allocation4], %s638
          %640 = dma.done %s636, 256
        $region44: #{tpu_custom_call.1} parent=39 // pred_fallthru
          _
      $region40: #{tpu_custom_call.1} parent=5 // pred_fallthru
        _
    $region6: #{tpu_custom_call.1} parent=1 // loop_footer
      %s23 = sadd.s32 1, %s19
    $region7: #{tpu_custom_call.1} parent=1 // loop_footer_branch
      %18 = sbr.rel target = $region3
    $region8: #{tpu_custom_call.1} parent=1 // loop_exit
      _
    %641 = vsyncpa [#allocation5], 1
    %s642 = scalar_lea.sflag [#allocation5], 1
    %643 = vsyncpa %s642, 1

</llo_original>
